<compile_context>
chip_gen: v7x
topology: tpu7x:2x2x1
jax: 0.10.0
libtpu: 0.0.40
codegen_flags: <defaults>
</compile_context>

<pallas_src>
import functools

import numpy as np
import jax
import jax.numpy as jnp
from jax import lax
from jax.experimental import pallas as pl
from jax.experimental.pallas import tpu as pltpu

LN_EPS = 1e-5


def _round_up(v, m):
    return (v + m - 1) // m * m


def _layer_norm(x, gamma, beta):
    """PyTorch-style LayerNorm over the last axis (biased variance, eps=1e-5)."""
    mean = jnp.mean(x, axis=-1, keepdims=True)
    xc = x - mean
    var = jnp.mean(xc * xc, axis=-1, keepdims=True)
    return xc * lax.rsqrt(var + LN_EPS) * gamma + beta


# ---------------------------------------------------------------------------
# 1) Patch embedding (+ cls token + positional embedding + padding)
# ---------------------------------------------------------------------------

def patch_embed_kernel(p_ref, w_ref, add_ref, o_ref):
    # p_ref : (1, N_pad, C*P*P) bf16 -- row 0 (cls slot) and padded rows are zeros.
    # w_ref : (C*P*P, E) bf16        -- conv weight, already reshaped/transposed.
    # add_ref: (N_pad, E) f32        -- row 0: cls + pos[0]; rows 1..Np: pos + conv bias;
    #                                   padded rows: 0.  (Bias is folded here so the
    #                                   matmul result for zero rows stays exactly 0.)
    proj = jnp.dot(p_ref[0], w_ref[...], preferred_element_type=jnp.float32)
    o_ref[0] = (proj + add_ref[...]).astype(o_ref.dtype)


def patch_embed_pallas(patches_padded, w_t_bf16, add_term):
    B, N_pad, CPP = patches_padded.shape
    E = w_t_bf16.shape[1]
    return pl.pallas_call(
        patch_embed_kernel,
        out_shape=jax.ShapeDtypeStruct((B, N_pad, E), jnp.float32),
        grid_spec=pltpu.PrefetchScalarGridSpec(
            num_scalar_prefetch=0,
            grid=(B,),
            in_specs=[pl.BlockSpec((1, N_pad, CPP), lambda b: (b, 0, 0)),
                      pl.BlockSpec((CPP, E), lambda b: (0, 0)),
                      pl.BlockSpec((N_pad, E), lambda b: (0, 0))],
            out_specs=pl.BlockSpec((1, N_pad, E), lambda b: (b, 0, 0)),
        ),
        compiler_params=pltpu.CompilerParams(dimension_semantics=("parallel",)),
    )(patches_padded, w_t_bf16, add_term)


# ---------------------------------------------------------------------------
# 2) Fused transformer encoder layer
# ---------------------------------------------------------------------------

def encoder_layer_kernel(x_ref, g1_ref, b1_ref, wqkv_ref, bqkv_ref, wo_ref, bo_ref,
                         g2_ref, b2_ref, w1_ref, bm1_ref, w2_ref, bm2_ref,
                         o_ref, attn_scr,
                         *, num_heads, head_dim, scale, n_valid):
    x = x_ref[0]                                        # (N_pad, E) f32
    n_pad, e = x.shape

    # ---- pre-norm attention ------------------------------------------------
    xn = _layer_norm(x, g1_ref[0], b1_ref[0])
    xn_bf = xn.astype(jnp.bfloat16)

    # Fused QKV: one MXU pass with a 3E-wide output; bias added once (not per head).
    qkv = jnp.dot(xn_bf, wqkv_ref[...],
                  preferred_element_type=jnp.float32) + bqkv_ref[0]   # (N_pad, 3E)
    q = qkv[:, :e]
    k = qkv[:, e:2 * e]
    v = qkv[:, 2 * e:]

    # Mask padded key columns (sequence padded up to a sublane multiple).
    key_ok = lax.broadcasted_iota(jnp.int32, (n_pad, n_pad), 1) < n_valid
    neg_big = jnp.float32(-1e30)

    # Static per-head loop: no (N,H,D)->(H,N,D) transposes, no full (H,N,N) score
    # tensor alive at once; each head writes its (N, D) slab into a column slice
    # of the VMEM scratch accumulator.
    for h in range(num_heads):
        sl = slice(h * head_dim, (h + 1) * head_dim)
        qh = (q[:, sl] * scale).astype(jnp.bfloat16)
        kh = k[:, sl].astype(jnp.bfloat16)
        vh = v[:, sl].astype(jnp.bfloat16)
        # q @ k^T without materializing the transpose.
        s = lax.dot_general(qh, kh, (((1,), (1,)), ((), ())),
                            preferred_element_type=jnp.float32)       # (N_pad, N_pad)
        s = jnp.where(key_ok, s, neg_big)
        s = s - jnp.max(s, axis=-1, keepdims=True)
        p = jnp.exp(s)
        denom = jnp.sum(p, axis=-1, keepdims=True)
        p = (p * pl.reciprocal(denom, approx=True)).astype(jnp.bfloat16)
        attn_scr[:, sl] = jnp.dot(p, vh, preferred_element_type=jnp.float32)

    attn = attn_scr[...].astype(jnp.bfloat16)
    attn_out = jnp.dot(attn, wo_ref[...],
                       preferred_element_type=jnp.float32) + bo_ref[0]
    x1 = x + attn_out            # dropout1 == identity at inference

    # ---- pre-norm MLP --------------------------------------------------------
    x2n = _layer_norm(x1, g2_ref[0], b2_ref[0]).astype(jnp.bfloat16)
    h1 = jnp.dot(x2n, w1_ref[...], preferred_element_type=jnp.float32) + bm1_ref[0]
    h1 = jnp.maximum(h1, 0.0).astype(jnp.bfloat16)      # ReLU (dropout == identity)
    mlp = jnp.dot(h1, w2_ref[...], preferred_element_type=jnp.float32) + bm2_ref[0]
    o_ref[0] = (x1 + mlp).astype(o_ref.dtype)


def encoder_layer_pallas(x, g1, b1, wqkv, bqkv, wo, bo, g2, b2, w1, bm1, w2, bm2,
                         *, num_heads, n_valid):
    B, N_pad, E = x.shape
    Hd = w1.shape[1]
    head_dim = E // num_heads
    scale = float(head_dim) ** -0.5

    kernel = functools.partial(encoder_layer_kernel,
                               num_heads=num_heads, head_dim=head_dim,
                               scale=scale, n_valid=n_valid)
    rep = lambda b: (0, 0)
    return pl.pallas_call(
        kernel,
        out_shape=jax.ShapeDtypeStruct((B, N_pad, E), jnp.float32),
        grid_spec=pltpu.PrefetchScalarGridSpec(
            num_scalar_prefetch=0,
            grid=(B,),
            in_specs=[pl.BlockSpec((1, N_pad, E), lambda b: (b, 0, 0)),
                      pl.BlockSpec((1, E), rep), pl.BlockSpec((1, E), rep),
                      pl.BlockSpec((E, 3 * E), rep), pl.BlockSpec((1, 3 * E), rep),
                      pl.BlockSpec((E, E), rep), pl.BlockSpec((1, E), rep),
                      pl.BlockSpec((1, E), rep), pl.BlockSpec((1, E), rep),
                      pl.BlockSpec((E, Hd), rep), pl.BlockSpec((1, Hd), rep),
                      pl.BlockSpec((Hd, E), rep), pl.BlockSpec((1, E), rep)],
            out_specs=pl.BlockSpec((1, N_pad, E), lambda b: (b, 0, 0)),
            scratch_shapes=[pltpu.VMEM((N_pad, E), jnp.float32)],
        ),
        compiler_params=pltpu.CompilerParams(dimension_semantics=("parallel",)),
    )(x, g1, b1, wqkv, bqkv, wo, bo, g2, b2, w1, bm1, w2, bm2)


# ---------------------------------------------------------------------------
# 3) Classification head (LayerNorm + Linear on cls token)
# ---------------------------------------------------------------------------

def head_kernel(x_ref, g_ref, b_ref, w_ref, bw_ref, o_ref):
    xn = _layer_norm(x_ref[...], g_ref[0], b_ref[0])
    logits = jnp.dot(xn.astype(jnp.bfloat16), w_ref[...],
                     preferred_element_type=jnp.float32) + bw_ref[0]
    o_ref[...] = logits.astype(o_ref.dtype)


def head_pallas(cls_x, gamma, beta, w_t_bf16, bias):
    B, E = cls_x.shape
    NC = w_t_bf16.shape[1]
    return pl.pallas_call(
        head_kernel,
        out_shape=jax.ShapeDtypeStruct((B, NC), jnp.float32),
    )(cls_x, gamma.reshape(1, E), beta.reshape(1, E), w_t_bf16, bias.reshape(1, NC))


# ---------------------------------------------------------------------------
# Host-side wrapper (layout prep only; all compute is inside the kernels)
# ---------------------------------------------------------------------------

def extract_patches(x, patch_size):
    """Conv2d(kernel=stride=P) is exactly: non-overlapping patch extraction + matmul."""
    B, C, H, W = x.shape
    P = patch_size
    gh, gw = H // P, W // P
    x = x.reshape(B, C, gh, P, gw, P).transpose(0, 2, 4, 1, 3, 5)
    return x.reshape(B, gh * gw, C * P * P)


def vit_forward_pallas(x, params, cfg):
    # TODO(synk): dropout layers are identity at inference and are not emitted.
    B = x.shape[0]
    P, E, H, Hd = cfg['patch_size'], cfg['embed_dim'], cfg['num_heads'], cfg['hidden_dim']
    Np = (cfg['img_size'] // P) ** 2
    N = Np + 1                      # +1 for cls token
    N_pad = _round_up(N, 8)         # sublane alignment; padded keys masked in softmax
    CPP = cfg['in_channels'] * P * P

    # --- patch embedding inputs ------------------------------------------
    patches = extract_patches(x, P)                                  # (B, Np, CPP)
    patches_padded = jnp.zeros((B, N_pad, CPP), jnp.float32)
    patches_padded = patches_padded.at[:, 1:N, :].set(patches).astype(jnp.bfloat16)

    w_patch_t = params['patch_w'].T.astype(jnp.bfloat16)             # (CPP, E)
    add_term = jnp.zeros((N_pad, E), jnp.float32)
    add_term = add_term.at[0].set(params['cls'] + params['pos'][0])
    add_term = add_term.at[1:N].set(params['pos'][1:N] + params['patch_b'])

    hstate = patch_embed_pallas(patches_padded, w_patch_t, add_term)  # (B, N_pad, E)

    # --- encoder layers ----------------------------------------------------
    for lp in params['layers']:
        wqkv = jnp.concatenate([lp['wq'].T, lp['wk'].T, lp['wv'].T],
                               axis=1).astype(jnp.bfloat16)           # (E, 3E)
        bqkv = jnp.concatenate([lp['bq'], lp['bk'], lp['bv']]).reshape(1, 3 * E)
        hstate = encoder_layer_pallas(
            hstate,
            lp['g1'].reshape(1, E), lp['b1'].reshape(1, E),
            wqkv, bqkv,
            lp['wo'].T.astype(jnp.bfloat16), lp['bo'].reshape(1, E),
            lp['g2'].reshape(1, E), lp['b2'].reshape(1, E),
            lp['w1'].T.astype(jnp.bfloat16), lp['b1m'].reshape(1, Hd),
            lp['w2'].T.astype(jnp.bfloat16), lp['b2m'].reshape(1, E),
            num_heads=H, n_valid=N)

    cls_x = hstate[:, 0, :]                                           # (B, E)
    return head_pallas(cls_x, params['head_g'], params['head_b'],
                       params['head_w'].T.astype(jnp.bfloat16), params['head_bias'])


# ---------------------------------------------------------------------------
# Reference (pure f32 JAX, mirrors the PyTorch module) + parameter init
# ---------------------------------------------------------------------------

def get_positional_embeddings(num_tokens, embed_dim):
    pos = np.ones((num_tokens, embed_dim), dtype=np.float32)
    for i in range(num_tokens):
        for j in range(embed_dim):
            if j % 2 == 0:
                pos[i, j] = np.sin(i / 10000 ** (j / embed_dim))
            else:
                pos[i, j] = np.cos(i / 10000 ** ((j - 1) / embed_dim))
    return jnp.asarray(pos)


def init_params(key, cfg):
    C, P, E = cfg['in_channels'], cfg['patch_size'], cfg['embed_dim']
    Hd, L, NC = cfg['hidden_dim'], cfg['num_layers'], cfg['num_classes']
    CPP = C * P * P
    Np = (cfg['img_size'] // P) ** 2
    keys = iter(jax.random.split(key, 64))

    def lin(out_d, in_d):
        bound = 1.0 / np.sqrt(in_d)
        w = jax.random.uniform(next(keys), (out_d, in_d), jnp.float32, -bound, bound)
        b = jax.random.uniform(next(keys), (out_d,), jnp.float32, -bound, bound)
        return w, b

    params = {}
    params['patch_w'], params['patch_b'] = lin(E, CPP)    # conv weight as (E, C*P*P)
    params['cls'] = 0.02 * jax.random.normal(next(keys), (E,), jnp.float32)
    params['pos'] = get_positional_embeddings(Np + 1, E)
    layers = []
    for _ in range(L):
        lp = {}
        lp['g1'] = 1.0 + 0.1 * jax.random.normal(next(keys), (E,), jnp.float32)
        lp['b1'] = 0.1 * jax.random.normal(next(keys), (E,), jnp.float32)
        lp['wq'], lp['bq'] = lin(E, E)
        lp['wk'], lp['bk'] = lin(E, E)
        lp['wv'], lp['bv'] = lin(E, E)
        lp['wo'], lp['bo'] = lin(E, E)
        lp['g2'] = 1.0 + 0.1 * jax.random.normal(next(keys), (E,), jnp.float32)
        lp['b2'] = 0.1 * jax.random.normal(next(keys), (E,), jnp.float32)
        lp['w1'], lp['b1m'] = lin(Hd, E)
        lp['w2'], lp['b2m'] = lin(E, Hd)
        layers.append(lp)
    params['layers'] = layers
    params['head_g'] = 1.0 + 0.1 * jax.random.normal(next(keys), (E,), jnp.float32)
    params['head_b'] = 0.1 * jax.random.normal(next(keys), (E,), jnp.float32)
    params['head_w'], params['head_bias'] = lin(NC, E)
    return params


def vit_reference(x, params, cfg):
    B = x.shape[0]
    P, E, H = cfg['patch_size'], cfg['embed_dim'], cfg['num_heads']
    D = E // H
    patches = extract_patches(x, P)
    emb = patches @ params['patch_w'].T + params['patch_b']
    cls = jnp.broadcast_to(params['cls'].reshape(1, 1, E), (B, 1, E))
    h = jnp.concatenate([cls, emb], axis=1) + params['pos'][None]
    N = h.shape[1]
    for lp in params['layers']:
        hn = _layer_norm(h, lp['g1'], lp['b1'])
        q = (hn @ lp['wq'].T + lp['bq']).reshape(B, N, H, D).transpose(0, 2, 1, 3)
        k = (hn @ lp['wk'].T + lp['bk']).reshape(B, N, H, D).transpose(0, 2, 1, 3)
        v = (hn @ lp['wv'].T + lp['bv']).reshape(B, N, H, D).transpose(0, 2, 1, 3)
        s = jnp.einsum('bhqd,bhkd->bhqk', q * (D ** -0.5), k)
        w = jax.nn.softmax(s, axis=-1)
        o = jnp.einsum('bhqk,bhkd->bhqd', w, v).transpose(0, 2, 1, 3).reshape(B, N, E)
        h = h + (o @ lp['wo'].T + lp['bo'])
        hn2 = _layer_norm(h, lp['g2'], lp['b2'])
        mlp = jnp.maximum(hn2 @ lp['w1'].T + lp['b1m'], 0.0) @ lp['w2'].T + lp['b2m']
        h = h + mlp
    cls_out = _layer_norm(h[:, 0], params['head_g'], params['head_b'])
    return cls_out @ params['head_w'].T + params['head_bias']


if __name__ == "__main__":
    cfg = dict(img_size=16, patch_size=4, in_channels=4, num_classes=10,
               embed_dim=32, num_heads=4, hidden_dim=64, num_layers=2)
    key = jax.random.PRNGKey(0)
    kx, kp = jax.random.split(key)
    x = jax.random.normal(
        kx, (2, cfg['in_channels'], cfg['img_size'], cfg['img_size']), jnp.float32)
    params = init_params(kp, cfg)

    out = vit_forward_pallas(x, params, cfg)
    out = jax.block_until_ready(out)

    ref = vit_reference(x, params, cfg)
    assert out.shape == (2, cfg['num_classes'])
    max_err = float(jnp.max(jnp.abs(out - ref)))
    # bf16 MXU operands + approx reciprocal => relaxed tolerance vs the f32 reference.
    assert jnp.allclose(out, ref, atol=5e-2, rtol=5e-2), f"max abs err {max_err}"

    print("KERNEL_OK")
</pallas_src>

<mosaic_0001>
module attributes {stable_mosaic.version = 11 : i64} {
  func.func @patch_embed_kernel(%arg0: i32, %arg1: memref<1x24x64xbf16, #tpu.memory_space<vmem>>, %arg2: memref<64x32xbf16, #tpu.memory_space<vmem>>, %arg3: memref<24x32xf32, #tpu.memory_space<vmem>>, %arg4: memref<1x24x32xf32, #tpu.memory_space<vmem>>) attributes {dimension_semantics = [#tpu.dimension_semantics<parallel>], iteration_bounds = array<i64: 2>, scalar_prefetch = 0 : i64, scratch_operands = 0 : i64, tpu.core_type = #tpu.core_type<tc>, window_params = [{transform_indices = @transform_0, window_bounds = array<i64: 1, 24, 64>}, {pipeline_mode = #tpu.pipeline_mode<synchronous>, transform_indices = @transform_1, window_bounds = array<i64: 64, 32>}, {pipeline_mode = #tpu.pipeline_mode<synchronous>, transform_indices = @transform_2, window_bounds = array<i64: 24, 32>}, {transform_indices = @transform_3, window_bounds = array<i64: 1, 24, 32>}]} {
    %c0 = arith.constant 0 : index
    %c0_0 = arith.constant 0 : index
    %c0_1 = arith.constant 0 : index
    %0 = vector.load %arg1[%c0, %c0_0, %c0_1] : memref<1x24x64xbf16, #tpu.memory_space<vmem>>, vector<1x24x64xbf16>
    %1 = vector.shape_cast %0 : vector<1x24x64xbf16> to vector<24x64xbf16>
    %c0_2 = arith.constant 0 : index
    %c0_3 = arith.constant 0 : index
    %2 = vector.load %arg2[%c0_2, %c0_3] : memref<64x32xbf16, #tpu.memory_space<vmem>>, vector<64x32xbf16>
    %cst = arith.constant dense<0.000000e+00> : vector<24x32xf32>
    %3 = tpu.matmul %1, %2, %cst {dimension_numbers = #tpu.dot_dimension_numbers<[1], [0], [0], [1], [0, 0, 1, 1], [], []>} : vector<24x64xbf16>, vector<64x32xbf16>, vector<24x32xf32> -> vector<24x32xf32>
    %c0_4 = arith.constant 0 : index
    %c0_5 = arith.constant 0 : index
    %4 = vector.load %arg3[%c0_4, %c0_5] : memref<24x32xf32, #tpu.memory_space<vmem>>, vector<24x32xf32>
    %5 = arith.addf %3, %4 : vector<24x32xf32>
    %c0_6 = arith.constant 0 : index
    %c0_7 = arith.constant 0 : index
    %c0_8 = arith.constant 0 : index
    %6 = vector.load %arg4[%c0_6, %c0_7, %c0_8] : memref<1x24x32xf32, #tpu.memory_space<vmem>>, vector<1x24x32xf32>
    %7 = vector.shape_cast %6 : vector<1x24x32xf32> to vector<24x32xf32>
    %8 = vector.shape_cast %5 : vector<24x32xf32> to vector<1x24x32xf32>
    tpu.vector_store %arg4[%c0_6, %c0_7, %c0_8], %8 {strides = array<i32>} : memref<1x24x32xf32, #tpu.memory_space<vmem>>, vector<1x24x32xf32>,
    return
  }
  func.func @transform_0(%arg0: i32) -> (i32, i32, i32) {
    %c0_i32 = arith.constant 0 : i32
    %c0_i32_0 = arith.constant 0 : i32
    %c0_i32_1 = arith.constant 0 : i32
    return %arg0, %c0_i32, %c0_i32_0 : i32, i32, i32
  }
  func.func @transform_1(%arg0: i32) -> (i32, i32) {
    %c0_i32 = arith.constant 0 : i32
    %c0_i32_0 = arith.constant 0 : i32
    %c0_i32_1 = arith.constant 0 : i32
    return %c0_i32, %c0_i32_0 : i32, i32
  }
  func.func @transform_2(%arg0: i32) -> (i32, i32) {
    %c0_i32 = arith.constant 0 : i32
    %c0_i32_0 = arith.constant 0 : i32
    %c0_i32_1 = arith.constant 0 : i32
    return %c0_i32, %c0_i32_0 : i32, i32
  }
  func.func @transform_3(%arg0: i32) -> (i32, i32, i32) {
    %c0_i32 = arith.constant 0 : i32
    %c0_i32_0 = arith.constant 0 : i32
    %c0_i32_1 = arith.constant 0 : i32
    return %arg0, %c0_i32, %c0_i32_0 : i32, i32, i32
  }
}

</mosaic_0001>

<llo_original>
// kernel: tpu_custom_call.1
$region0: #{tpu_custom_call.1}
  #allocation0 [shape = 'u32[]', space=smem, size = 0x4, offset = 0x4, fixed_abs, tag = 'smem constant byte address 0x4 - core index']
  #allocation1 [shape = 'u32[144,128]{1,0:T(1,128)}', space=vmem, size = 0x12000, scoped, tag = 'internal scratch']
  %s0 = inlined_call_operand.vmem [shape: bf16[2,24,64], index: 0, kind: input, shape index: {}]
  %s1 = inlined_call_operand.vmem [shape: bf16[64,32], index: 1, kind: input, shape index: {}]
  %s2 = inlined_call_operand.vmem [shape: f32[24,32], index: 2, kind: input, shape index: {}]
  %s3 = inlined_call_operand.hbm [shape: f32[2,24,32], index: 3, kind: output, shape index: {}]
  %s4 = sld [smem:[#allocation0]]
  $region45: #{tpu_custom_call.1} parent=0
    _
  %s6 = ssub.s32 1, %s4
  %s7 = scalar_select 0, %s6, %s4
  $region1: #{tpu_custom_call.1} parent=0
    #allocation2 [shape = 'u8[24576]{0}', space=vmem, size = 0x6000, scoped, tag = 'output window, operand 0']
    #allocation3 [shape = 's32[2]{0}', space=sflag, size = 0x8, scoped, tag = 'scoped memory for tpu_custom_call.1']
    %8 = vsyncpa [#allocation3], 0
    %s9 = scalar_lea.sflag [#allocation3], 1
    %10 = vsyncpa %s9, 0
    loop: start=0, step=1, limit=4
    $region2: #{tpu_custom_call.1} parent=1 // loop_pre_header
      _
    $region3: #{tpu_custom_call.1} parent=1 // loop_header
      %s12 = sphi 0, %s16
      %p13 = scmp.ge.s32.totalorder %s12, 4
      %s22 = sphi 0, %s24
      %s25 = sphi 0, %s22
      %s26 = sphi 0, %s25
      %s42 = sphi 0, %s26
      %s46 = sphi 0, %s46
      %s48 = sphi 0, %s46
      %s49 = sphi 0, %s48
      %s63 = sphi 0, %s49
      %s67 = sphi 0, %s67
      %s69 = sphi 0, %s67
      %s70 = sphi 0, %s69
      %s84 = sphi 0, %s70
      %s90 = sphi 0, %s92
      %s93 = sphi 0, %s90
      %s94 = sphi 0, %s93
      %s110 = sphi 0, %s94
    $region4: #{tpu_custom_call.1} parent=1 // loop_header_branch
      %15 = sbr.rel (%p13) target = $region8
    $region5: #{tpu_custom_call.1} parent=1 // loop_body
      %s17 = ssub.s32 %s12, 1
      %s18 = ssub.s32 %s12, 2
      %s19 = sadd.s32 %s12, 1
      %s20 = ssub.s32 %s12, %s19
      %p21 = scmp.eq.s32.totalorder %s20, 0
      %s23 = sadd.s32 %s22, 1
      %s24 = scalar_select %p21, %s22, %s23
      %p27 = pneg %p21
      %p28 = scmp.eq.s32.totalorder %s12, 1
      %p29 = por %p27, %p28
      %p30 = scmp.ne.s32.totalorder %s22, %s25
      %p31 = scmp.eq.s32.totalorder %s12, 0
      %p32 = por %p30, %p31
      %p33 = scmp.ne.s32.totalorder %s22, %s25
      %p34 = scmp.eq.s32.totalorder %s17, 1
      %p35 = por %p33, %p34
      %p36 = scmp.ne.s32.totalorder %s25, %s26
      %p37 = scmp.eq.s32.totalorder %s17, 0
      %p38 = por %p36, %p37
      %p39 = scmp.ne.s32.totalorder %s25, %s26
      %p40 = scmp.eq.s32.totalorder %s18, 1
      %p41 = por %p39, %p40
      %p43 = scmp.ne.s32.totalorder %s26, %s42
      %p44 = scmp.eq.s32.totalorder %s18, 0
      %p45 = por %p43, %p44
      %s47 = sadd.s32 %s46, 1
      %p50 = scmp.eq.s32.totalorder %s12, 1
      %p51 = scmp.ne.s32.totalorder %s46, %s48
      %p52 = scmp.eq.s32.totalorder %s12, 0
      %p53 = por %p51, %p52
      %p54 = scmp.ne.s32.totalorder %s46, %s48
      %p55 = scmp.eq.s32.totalorder %s17, 1
      %p56 = por %p54, %p55
      %p57 = scmp.ne.s32.totalorder %s48, %s49
      %p58 = scmp.eq.s32.totalorder %s17, 0
      %p59 = por %p57, %p58
      %p60 = scmp.ne.s32.totalorder %s48, %s49
      %p61 = scmp.eq.s32.totalorder %s18, 1
      %p62 = por %p60, %p61
      %p64 = scmp.ne.s32.totalorder %s49, %s63
      %p65 = scmp.eq.s32.totalorder %s18, 0
      %p66 = por %p64, %p65
      %s68 = sadd.s32 %s67, 1
      %p71 = scmp.eq.s32.totalorder %s12, 1
      %p72 = scmp.ne.s32.totalorder %s67, %s69
      %p73 = scmp.eq.s32.totalorder %s12, 0
      %p74 = por %p72, %p73
      %p75 = scmp.ne.s32.totalorder %s67, %s69
      %p76 = scmp.eq.s32.totalorder %s17, 1
      %p77 = por %p75, %p76
      %p78 = scmp.ne.s32.totalorder %s69, %s70
      %p79 = scmp.eq.s32.totalorder %s17, 0
      %p80 = por %p78, %p79
      %p81 = scmp.ne.s32.totalorder %s69, %s70
      %p82 = scmp.eq.s32.totalorder %s18, 1
      %p83 = por %p81, %p82
      %p85 = scmp.ne.s32.totalorder %s70, %s84
      %p86 = scmp.eq.s32.totalorder %s18, 0
      %p87 = por %p85, %p86
      %s88 = ssub.s32 %s12, %s19
      %p89 = scmp.eq.s32.totalorder %s88, 0
      %s91 = sadd.s32 %s90, 1
      %s92 = scalar_select %p89, %s90, %s91
      %p95 = pneg %p89
      %p96 = scmp.eq.s32.totalorder %s12, 1
      %p97 = por %p95, %p96
      %p98 = scmp.ne.s32.totalorder %s90, %s93
      %p99 = scmp.eq.s32.totalorder %s12, 0
      %p100 = por %p98, %p99
      %p101 = scmp.ne.s32.totalorder %s90, %s93
      %p102 = scmp.eq.s32.totalorder %s17, 1
      %p103 = por %p101, %p102
      %p104 = scmp.ne.s32.totalorder %s93, %s94
      %p105 = scmp.eq.s32.totalorder %s17, 0
      %p106 = por %p104, %p105
      %p107 = scmp.ne.s32.totalorder %s93, %s94
      %p108 = scmp.eq.s32.totalorder %s18, 1
      %p109 = por %p107, %p108
      %p111 = scmp.ne.s32.totalorder %s94, %s110
      %p112 = scmp.eq.s32.totalorder %s18, 0
      %p113 = por %p111, %p112
      %p114 = scmp.le.s32.totalorder 1, %s12
      %p115 = scmp.lt.s32.totalorder %s12, 3
      %p116 = pnand %p114, %p115
      %p117 = pneg %p116
      // Predicated region
      $region9: #{tpu_custom_call.1} parent=5 // pred_check
        _
      $region10: #{tpu_custom_call.1} parent=5 // pred_check_branch
        %119 = sbr.rel (%p116) target = $region12
      $region11: #{tpu_custom_call.1} parent=5 // pred_region
        %s120 = ssub.s32 %s12, 1
        // Predicated region
        $region13: #{tpu_custom_call.1} parent=11 // pred_check
          %p121 = pneg %p59
        $region14: #{tpu_custom_call.1} parent=11 // pred_check_branch
          %123 = sbr.rel (%p121) target = $region16
        $region15: #{tpu_custom_call.1} parent=11 // pred_region
          _
        $region16: #{tpu_custom_call.1} parent=11 // pred_fallthru
          _
        // Predicated region
        $region17: #{tpu_custom_call.1} parent=11 // pred_check
          %p124 = pneg %p80
        $region18: #{tpu_custom_call.1} parent=11 // pred_check_branch
          %126 = sbr.rel (%p124) target = $region20
        $region19: #{tpu_custom_call.1} parent=11 // pred_region
          _
        $region20: #{tpu_custom_call.1} parent=11 // pred_fallthru
          _
      $region12: #{tpu_custom_call.1} parent=5 // pred_fallthru
        _
      %p127 = scmp.lt.s32.totalorder %s12, 2
      // Predicated region
      $region21: #{tpu_custom_call.1} parent=5 // pred_check
        %p128 = pneg %p127
      $region22: #{tpu_custom_call.1} parent=5 // pred_check_branch
        %130 = sbr.rel (%p128) target = $region24
      $region23: #{tpu_custom_call.1} parent=5 // pred_region
        // Predicated region
        $region25: #{tpu_custom_call.1} parent=23 // pred_check
          %p131 = pneg %p32
        $region26: #{tpu_custom_call.1} parent=23 // pred_check_branch
          %133 = sbr.rel (%p131) target = $region28
        $region27: #{tpu_custom_call.1} parent=23 // pred_region
          %p134 = scmp.lt.s32.totalorder %s12, 1
          %s135 = scalar_select %p134, %s12, 1
          %s136 = smul.addr %s135, 3
          %s137 = smul.addr %s136, 4
          %s138 = scalar_lea.vmem %s0, %s137
        $region28: #{tpu_custom_call.1} parent=23 // pred_fallthru
          _
      $region24: #{tpu_custom_call.1} parent=5 // pred_fallthru
        _
      %p139 = scmp.le.s32.totalorder 1, %s12
      %p140 = scmp.lt.s32.totalorder %s12, 3
      %p141 = pnand %p139, %p140
      %p142 = pneg %p141
      // Predicated region
      $region29: #{tpu_custom_call.1} parent=5 // pred_check
        _
      $region30: #{tpu_custom_call.1} parent=5 // pred_check_branch
        %144 = sbr.rel (%p141) target = $region32
      $region31: #{tpu_custom_call.1} parent=5 // pred_region
        %s145 = ssub.s32 %s12, 1
        %p146 = scmp.lt.s32.totalorder %s17, 1
        %s147 = scalar_select %p146, %s17, 1
        %s148 = smul.addr %s147, 3
        %s149 = smul.addr %s148, 4
        %s150 = scalar_lea.vmem %s0, %s149
        %p151 = pneg %p38
        %p152 = pneg %p35
        %p153 = pneg %p59
        %p154 = pneg %p56
        %p155 = pneg %p80
        %p156 = pneg %p77
        %p157 = pneg %p106
        %p158 = pneg %p103
        %s159 = sand.u32 %s93, 1
        %s160 = scalar_lea.sflag [#allocation3], %s159
        %s161 = sand.u32 %s93, 1
        %s162 = smul.addr %s161, 24
        %s163 = scalar_lea.vmem [#allocation2], %s162
        %p164 = scmp.lt.s32.totalorder %s17, 1
        %s165 = scalar_select %p164, %s17, 1
        %s166 = smul.addr %s165, 3
        %s167 = smul.addr %s166, 4
        %s168 = scalar_lea.vmem %s0, %s167
        %v170 = vld [vmem:[%s168] sm:$0xf]
        %v171 = vld [vmem:[%s168 + $0x4] sm:$0xf]
        %v172 = vld [vmem:[%s168 + $0x8] sm:$0xf]
        %v173 = vld [vmem:[%s1] sm:$0xf]
        %v174 = vld [vmem:[%s1 + $0x4] sm:$0xf]
        %v175 = vld [vmem:[%s1 + $0x8] sm:$0xf]
        %v176 = vld [vmem:[%s1 + $0xc] sm:$0xf]
        %v177 = vld [vmem:[%s1 + $0x10] sm:$0xf]
        %v178 = vld [vmem:[%s1 + $0x14] sm:$0xf]
        %v179 = vld [vmem:[%s1 + $0x18] sm:$0xf]
        %v180 = vld [vmem:[%s1 + $0x1c] sm:$0xf]
        %v181 = vld [vmem:[%s2] sm:$0xff]
        %v182 = vld [vmem:[%s2 + $0x8] sm:$0xff]
        %v183 = vld [vmem:[%s2 + $0x10] sm:$0xff]
        %v187 = vunpack.c.l.b16 %v170
        %v188 = vunpack.c.l.b16 %v171
        %v189 = vunpack.c.l.b16 %v172
        %v190 = vpack.c.b16 %v188, %v187
        %v191 = vpack.c.b16 %v189, %v189
        %v200 = vunpack.c.l.b16 %v173
        %v201 = vunpack.c.l.b16 %v174
        %v202 = vunpack.c.l.b16 %v175
        %v203 = vunpack.c.l.b16 %v176
        %v204 = vunpack.c.l.b16 %v177
        %v205 = vunpack.c.l.b16 %v178
        %v206 = vunpack.c.l.b16 %v179
        %v207 = vunpack.c.l.b16 %v180
        %v208 = vpack.c.b16 %v201, %v200
        %v209 = vpack.c.b16 %v203, %v202
        %v210 = vpack.c.b16 %v205, %v204
        %v211 = vpack.c.b16 %v207, %v206
        %vm216 = vcmask 523264
        %v218 = vsel %vm216, %v190, 0
        %v221 = vsel %vm216, %v191, 0
        %223 = vmatprep.subr.bf16.mxu0 0
        %224 = vmatpush1.bf16.msra.mxu0 %v208
        %225 = vmatprep.subr.bf16.mxu0 0
        %226 = vmatpush1.bf16.msra.mxu0 %v209
        %227 = vmatprep.subr.bf16.mxu0 0
        %228 = vmatpush1.bf16.msra.mxu0 %v210
        %229 = vmatprep.subr.bf16.mxu0 0
        %230 = vmatpush1.bf16.msra.mxu0 %v211
        %231 = vmatprep.subr.bf16.mxu0 0
        %232 = vmatpush1.bf16.msra.mxu0 0
        %233 = vmatprep.subr.bf16.mxu0 0
        %234 = vmatpush1.bf16.msra.mxu0 0
        %235 = vmatprep.subr.bf16.mxu0 0
        %236 = vmatpush1.bf16.msra.mxu0 0
        %237 = vmatprep.subr.bf16.mxu0 0
        %238 = vmatpush1.bf16.msra.mxu0 0
        %239 = vmatprep.subr.bf16.mxu0 0
        %240 = vmatpush1.bf16.msra.mxu0 0
        %241 = vmatprep.subr.bf16.mxu0 0
        %242 = vmatpush1.bf16.msra.mxu0 0
        %243 = vmatprep.subr.bf16.mxu0 0
        %244 = vmatpush1.bf16.msra.mxu0 0
        %245 = vmatprep.subr.bf16.mxu0 0
        %246 = vmatpush1.bf16.msra.mxu0 0
        %247 = vmatprep.subr.bf16.mxu0 0
        %248 = vmatpush1.bf16.msra.mxu0 0
        %249 = vmatprep.subr.bf16.mxu0 0
        %250 = vmatpush1.bf16.msra.mxu0 0
        %251 = vmatprep.subr.bf16.mxu0 0
        %252 = vmatpush1.bf16.msra.mxu0 0
        %253 = vmatprep.subr.bf16.mxu0 0
        %254 = vmatpush1.bf16.msra.mxu0 0
        %255 = vmatprep.mubr.bf16.mxu0 0
        %256 = vmatmul.mubr.bf16.gmra.mrb[0].mxu0 %v218
        %v257 = vpop.f32.mrb[0].mxu0
        %v258 = vadd.f32 %v181, %v257
        %v259 = vpop.f32.mrb[0].mxu0
        %v260 = vpop.f32.mrb[0].mxu0
        %v261 = vadd.f32 %v182, %v260
        %v262 = vpop.f32.mrb[0].mxu0
        %263 = vmatprep.mubr.bf16.mxu0 0
        %264 = vmatmul.mubr.bf16.gmra.mrb[0].mxu0 %v221
        %v265 = vpop.f32.mrb[0].mxu0
        %v266 = vadd.f32 %v183, %v265
        %v267 = vpop.f32.mrb[0].mxu0
        %v268 = vpop.f32.mrb[0].mxu0
        %v269 = vpop.f32.mrb[0].mxu0
        %270 = vdwg.mxu0
        %vm271 = vcmask 261120
        %272 = vst.msk [vmem:[%s163] sm:$0xff] %vm271, %v258
        %273 = vst.msk [vmem:[%s163 + $0x8] sm:$0xff] %vm271, %v261
        %274 = vst.msk [vmem:[%s163 + $0x10] sm:$0xff] %vm271, %v266
        %s275 = sand.u32 %s93, 1
        %s276 = scalar_lea.sflag [#allocation3], %s275
        %s277 = sand.u32 %s93, 1
        %s278 = smul.addr %s277, 24
        %s279 = scalar_lea.vmem [#allocation2], %s278
        // Predicated region
        $region33: #{tpu_custom_call.1} parent=31 // pred_check
          %p280 = pneg %p103
        $region34: #{tpu_custom_call.1} parent=31 // pred_check_branch
          %282 = sbr.rel (%p280) target = $region36
        $region35: #{tpu_custom_call.1} parent=31 // pred_region
          %s284 = ssub.s32 384, 384
          %285 = vsyncadd %s276, %s284
          %s286 = smul.addr %s17, 3
          %s287 = smul.addr %s286, 128
          %s288 = scalar_lea.hbm %s3, %s287
          %s289 = sshll.u32 %s279, 4
          %s290 = int_to_ptr.vmem [resolvable:$true] %s289
          %295 = dma.vmem_to_hbm [thread:$0]  %s290, 384, %s288, %s276, 128, 128, 8
        $region36: #{tpu_custom_call.1} parent=31 // pred_fallthru
          _
      $region32: #{tpu_custom_call.1} parent=5 // pred_fallthru
        _
      %p296 = scmp.le.s32.totalorder 2, %s12
      // Predicated region
      $region37: #{tpu_custom_call.1} parent=5 // pred_check
        %p297 = pneg %p296
      $region38: #{tpu_custom_call.1} parent=5 // pred_check_branch
        %299 = sbr.rel (%p297) target = $region40
      $region39: #{tpu_custom_call.1} parent=5 // pred_region
        %s300 = ssub.s32 %s12, 2
        // Predicated region
        $region41: #{tpu_custom_call.1} parent=39 // pred_check
          %p301 = pneg %p109
        $region42: #{tpu_custom_call.1} parent=39 // pred_check_branch
          %303 = sbr.rel (%p301) target = $region44
        $region43: #{tpu_custom_call.1} parent=39 // pred_region
          %s304 = sand.u32 %s94, 1
          %s305 = scalar_lea.sflag [#allocation3], %s304
          %s306 = sand.u32 %s94, 1
          %s307 = smul.addr %s306, 24
          %s308 = scalar_lea.vmem [#allocation2], %s307
          %309 = dma.done %s305, 384
        $region44: #{tpu_custom_call.1} parent=39 // pred_fallthru
          _
      $region40: #{tpu_custom_call.1} parent=5 // pred_fallthru
        _
    $region6: #{tpu_custom_call.1} parent=1 // loop_footer
      %s16 = sadd.s32 1, %s12
    $region7: #{tpu_custom_call.1} parent=1 // loop_footer_branch
      %11 = sbr.rel target = $region3
    $region8: #{tpu_custom_call.1} parent=1 // loop_exit
      _
    %310 = vsyncpa [#allocation3], 1
    %s311 = scalar_lea.sflag [#allocation3], 1
    %312 = vsyncpa %s311, 1

</llo_original>
